<compile_context>
chip_gen: v5e
topology: v5e:2x2
jax: 0.10.0
libtpu: 0.0.40
codegen_flags: <defaults>
</compile_context>

<pallas_src>
import functools

import numpy as np
import jax
import jax.numpy as jnp
from jax.experimental import pallas as pl
from jax.experimental.pallas import tpu as pltpu


# ---------------------------------------------------------------------------
# Host-side device-aware sizing helpers.
# ---------------------------------------------------------------------------

def _device_kind():
    try:
        return jax.devices()[0].device_kind.lower()
    except Exception:
        return ""


def _vmem_limit_bytes():
    """Scoped-VMEM limit to request: ~80% of physical VMEM per generation."""
    phys = (64 << 20) if "v7" in _device_kind() else (128 << 20)
    return int(phys * 0.8)          # ~51 MiB on v7x, ~102 MiB on v5e/v6e


def _default_exp_dtype(compute_dtype):
    """bf16 exp on v6e/v7x (bf16 EUP); f32 on v5e/older (no bf16 EUP)."""
    if jnp.dtype(compute_dtype) != jnp.dtype(jnp.bfloat16):
        return jnp.float32
    kind = _device_kind()
    if any(tag in kind for tag in ("v5", "v4", "v3", "v2")):
        return jnp.float32
    return jnp.bfloat16


def _candidate_tiles(n):
    """Tile candidates for an axis of length n (largest first, 8-aligned or full)."""
    cands = {n}
    for c in (2048, 1024, 512, 256, 128, 64, 32, 16, 8):
        if c < n and n % c == 0:
            cands.add(c)
    return sorted((c for c in cands if c == n or c % 8 == 0), reverse=True)


def _attn_step_vmem_bytes(q_tile, T, C, H, cdt_b, exp_b, out_b):
    b = 0
    b += 2 * q_tile * C * cdt_b            # q input block (double-buffered)
    b += 2 * 2 * T * C * cdt_b             # k + v input blocks (double-buffered)
    b += (C * C + C) * cdt_b + C * 4       # Wp^T + bp (single-buffered)
    b += 2 * q_tile * C * out_b            # output block (double-buffered)
    b += (q_tile + 2 * T) * C * cdt_b      # head-major copies of q, k, v
    b += H * q_tile * T * 4                # scores s (f32)
    b += H * q_tile * T * exp_b            # p = exp(...)
    b += H * q_tile * T * cdt_b            # normalized p cast for the PV matmul
    b += q_tile * C * 4                    # per-head context (f32)
    b += q_tile * C * cdt_b                # ctx scratch
    return b


def _pick_q_tile(T, C, H, cdt_b, exp_b, out_b, budget):
    cands = _candidate_tiles(T)
    for c in cands:
        if _attn_step_vmem_bytes(c, T, C, H, cdt_b, exp_b, out_b) <= budget:
            return c
    # TODO(synk): for very long T even the smallest q_tile over-commits VMEM; a
    # flash-style KV-tiled online softmax would be needed there (not implemented).
    return cands[-1]


def _pick_row_tile(rows, C, cdt_b, budget):
    cands = _candidate_tiles(rows)
    for c in cands:
        b = (2 * c * C * cdt_b                      # x block (double-buffered)
             + 3 * C * C * cdt_b + 3 * C * 4        # stacked weights + biases
             + 3 * 2 * c * C * cdt_b)               # q/k/v output blocks
        if b <= budget:
            return c
    return cands[-1]


# ---------------------------------------------------------------------------
# Kernels.
# ---------------------------------------------------------------------------

def _qkv_proj_kernel(x_ref, wqkv_ref, bqkv_ref, q_ref, k_ref, v_ref):
    """Fused Q/K/V projection for one row tile of the flattened (B*T, C) input.

    The 1/sqrt(head_dim) softmax scale is pre-folded into Wq / bq host-side.
    """
    x = x_ref[...]                                                   # (rt, C)
    q_ref[...] = (jnp.dot(x, wqkv_ref[0], preferred_element_type=jnp.float32)
                  + bqkv_ref[0]).astype(q_ref.dtype)
    k_ref[...] = (jnp.dot(x, wqkv_ref[1], preferred_element_type=jnp.float32)
                  + bqkv_ref[1]).astype(k_ref.dtype)
    v_ref[...] = (jnp.dot(x, wqkv_ref[2], preferred_element_type=jnp.float32)
                  + bqkv_ref[2]).astype(v_ref.dtype)


def _attn_kernel(q_ref, k_ref, v_ref, wpT_ref, bp_ref, o_ref, ctx_ref, *,
                 num_heads, head_dim, exp_dtype):
    H, D = num_heads, head_dim
    Tq = q_ref.shape[1]
    T = k_ref.shape[1]
    cdt = q_ref.dtype

    # Head-major relayout, paid once per tensor; both attention matmuls then
    # run with the head axis as a leading batch dimension (no implicit
    # relayout inside the dot_generals).
    qh = jnp.transpose(q_ref[0].reshape(Tq, H, D), (1, 0, 2))        # (H, Tq, D)
    kh = jnp.transpose(k_ref[0].reshape(T, H, D), (1, 0, 2))         # (H, T,  D)
    vh = jnp.transpose(v_ref[0].reshape(T, H, D), (1, 0, 2))         # (H, T,  D)

    # Scaled scores (scale already folded into q); f32 accumulation.
    s = jnp.einsum('hqd,hkd->hqk', qh, kh,
                   preferred_element_type=jnp.float32)               # (H, Tq, T)
    m = jnp.max(s, axis=-1, keepdims=True)
    # exp in exp_dtype (bf16 on v6e/v7x, f32 on v5e); row-sum/reciprocal in f32.
    p = jnp.exp((s - m).astype(exp_dtype))
    denom = jnp.sum(p, axis=-1, keepdims=True, dtype=jnp.float32)
    # approx reciprocal (EUP): softmax rows do not sum *exactly* to 1.
    inv = pl.reciprocal(denom, approx=True)
    pw = (p * inv).astype(cdt)                                       # (H, Tq, T)
    # TODO(synk): attention dropout is identity in eval mode; training-mode
    # dropout (pltpu.prng_*) is not implemented.

    ctxh = jnp.einsum('hqk,hkd->hqd', pw, vh,
                      preferred_element_type=jnp.float32)            # (H, Tq, D)

    # Per-head writeback into a lane-dense (Tq, C) scratch instead of an
    # implicit transpose+reshape of the 3-D matmul result.
    for h in range(H):
        ctx_ref[:, h * D:(h + 1) * D] = ctxh[h].astype(ctx_ref.dtype)

    # Fused output projection.
    out = (jnp.dot(ctx_ref[...], wpT_ref[...],
                   preferred_element_type=jnp.float32) + bp_ref[...])
    o_ref[0] = out.astype(o_ref.dtype)


# ---------------------------------------------------------------------------
# Wrapper.
# ---------------------------------------------------------------------------

def _prep_params(params, num_heads, compute_dtype):
    """Transpose weights, fold softmax scale into Wq/bq, stack Q/K/V."""
    C = params["wq"].shape[0]
    D = C // num_heads
    scale = 1.0 / np.sqrt(D)

    wqkv_t = jnp.stack([(params["wq"] * scale).T, params["wk"].T, params["wv"].T],
                       axis=0).astype(compute_dtype)                       # (3, C, C)
    bqkv = jnp.stack([params["bq"] * scale, params["bk"], params["bv"]],
                     axis=0).reshape(3, 1, C).astype(jnp.float32)          # (3, 1, C)
    wp_t = params["wp"].T.astype(compute_dtype)                            # (C, C)
    bp = params["bp"].reshape(1, C).astype(jnp.float32)                    # (1, C)
    return wqkv_t, bqkv, wp_t, bp


def multi_head_attention(x, params, num_heads, *,
                         compute_dtype=jnp.bfloat16, exp_dtype=None,
                         q_tile=None, out_dtype=None):
    """x: (B, T, C) float32. params: PyTorch-convention (out, in) weights + biases."""
    B, T, C = x.shape
    assert C % num_heads == 0
    D = C // num_heads
    out_dtype = x.dtype if out_dtype is None else out_dtype
    if exp_dtype is None:
        exp_dtype = _default_exp_dtype(compute_dtype)

    cdt_b = jnp.dtype(compute_dtype).itemsize
    exp_b = jnp.dtype(exp_dtype).itemsize
    out_b = jnp.dtype(out_dtype).itemsize

    vmem_limit = _vmem_limit_bytes()
    budget = int(vmem_limit * 0.9)

    wqkv_t, bqkv, wp_t, bp = _prep_params(params, num_heads, compute_dtype)
    x_c = x.astype(compute_dtype)

    # ---- 1) Fused QKV projection (K/V computed exactly once). ----
    rows = B * T
    row_tile = _pick_row_tile(rows, C, cdt_b, budget)
    x_flat = x_c.reshape(rows, C)

    proj_cost = pl.CostEstimate(
        flops=6 * rows * C * C,
        transcendentals=0,
        bytes_accessed=(rows * C * cdt_b + 3 * C * C * cdt_b + 3 * C * 4
                        + 3 * rows * C * cdt_b))

    q, k, v = pl.pallas_call(
        _qkv_proj_kernel,
        out_shape=tuple(jax.ShapeDtypeStruct((rows, C), compute_dtype)
                        for _ in range(3)),
        grid=(rows // row_tile,),
        in_specs=[
            pl.BlockSpec((row_tile, C), lambda r: (r, 0)),             # x row tile
            pl.BlockSpec((3, C, C), lambda r: (0, 0, 0),
                         pipeline_mode=pl.Buffered(1)),                # Wq^T/Wk^T/Wv^T
            pl.BlockSpec((3, 1, C), lambda r: (0, 0, 0),
                         pipeline_mode=pl.Buffered(1)),                # biases (f32)
        ],
        out_specs=tuple(pl.BlockSpec((row_tile, C), lambda r: (r, 0))
                        for _ in range(3)),
        compiler_params=pltpu.CompilerParams(
            dimension_semantics=("parallel",),
            vmem_limit_bytes=vmem_limit),
        cost_estimate=proj_cost,
    )(x_flat, wqkv_t, bqkv)

    q = q.reshape(B, T, C)
    k = k.reshape(B, T, C)
    v = v.reshape(B, T, C)

    # ---- 2) Attention + output projection. ----
    if q_tile is None:
        q_tile = _pick_q_tile(T, C, num_heads, cdt_b, exp_b, out_b, budget)
    assert T % q_tile == 0 and (q_tile == T or q_tile % 8 == 0)
    num_q_tiles = T // q_tile

    attn_cost = pl.CostEstimate(
        flops=B * (4 * T * T * C + 2 * T * C * C),
        transcendentals=B * num_heads * T * T,
        bytes_accessed=(3 * B * T * C * cdt_b + C * C * cdt_b + C * 4
                        + B * T * C * out_b))

    kernel = functools.partial(_attn_kernel, num_heads=num_heads,
                               head_dim=D, exp_dtype=exp_dtype)

    return pl.pallas_call(
        kernel,
        out_shape=jax.ShapeDtypeStruct((B, T, C), out_dtype),
        grid=(B, num_q_tiles),          # qi innermost: K/V blocks stay resident
        in_specs=[
            pl.BlockSpec((1, q_tile, C), lambda b, qi: (b, qi, 0)),    # q tile
            pl.BlockSpec((1, T, C), lambda b, qi: (b, 0, 0)),          # k (per batch)
            pl.BlockSpec((1, T, C), lambda b, qi: (b, 0, 0)),          # v (per batch)
            pl.BlockSpec((C, C), lambda b, qi: (0, 0),
                         pipeline_mode=pl.Buffered(1)),                # Wp^T
            pl.BlockSpec((1, C), lambda b, qi: (0, 0),
                         pipeline_mode=pl.Buffered(1)),                # bp (f32)
        ],
        out_specs=pl.BlockSpec((1, q_tile, C), lambda b, qi: (b, qi, 0)),
        scratch_shapes=[pltpu.VMEM((q_tile, C), compute_dtype)],       # ctx slab
        compiler_params=pltpu.CompilerParams(
            dimension_semantics=("parallel", "parallel"),
            vmem_limit_bytes=vmem_limit),
        cost_estimate=attn_cost,
    )(q, k, v, wp_t, bp)


# ---------------------------------------------------------------------------
# Reference + test.
# ---------------------------------------------------------------------------

def _reference_mha(x, params, num_heads):
    """Plain-JAX f32 reference mirroring the PyTorch forward exactly."""
    B, T, C = x.shape
    D = C // num_heads
    lin = lambda a, w, b: a @ w.T + b
    q = lin(x, params["wq"], params["bq"]).reshape(B, T, num_heads, D).transpose(0, 2, 1, 3)
    k = lin(x, params["wk"], params["bk"]).reshape(B, T, num_heads, D).transpose(0, 2, 1, 3)
    v = lin(x, params["wv"], params["bv"]).reshape(B, T, num_heads, D).transpose(0, 2, 1, 3)
    att = (q @ k.transpose(0, 1, 3, 2)) * (1.0 / np.sqrt(D))
    att = jax.nn.softmax(att, axis=-1)
    out = att @ v
    out = out.transpose(0, 2, 1, 3).reshape(B, T, C)
    return lin(out, params["wp"], params["bp"])


if __name__ == "__main__":
    # config = {'num_heads': 4, 'embedding_dim': 32, 'dropout': 0.1}
    B, T, C, H = 2, 8, 32, 4

    key = jax.random.PRNGKey(0)
    keys = jax.random.split(key, 10)
    bound = 1.0 / np.sqrt(C)   # PyTorch nn.Linear default init range
    u = lambda k, shape: jax.random.uniform(k, shape, jnp.float32, -bound, bound)

    params = {
        "wq": u(keys[0], (C, C)), "bq": u(keys[1], (C,)),
        "wk": u(keys[2], (C, C)), "bk": u(keys[3], (C,)),
        "wv": u(keys[4], (C, C)), "bv": u(keys[5], (C,)),
        "wp": u(keys[6], (C, C)), "bp": u(keys[7], (C,)),
    }
    x = jax.random.normal(keys[8], (B, T, C), jnp.float32)

    ref = _reference_mha(x, params, H)

    # f32 MXU-input path: tolerance covers the approx (EUP) reciprocal.
    out_f32 = jax.block_until_ready(
        multi_head_attention(x, params, H, compute_dtype=jnp.float32))
    assert out_f32.shape == (B, T, C)
    assert np.allclose(np.asarray(out_f32), np.asarray(ref), atol=1e-2, rtol=1e-2)

    # bf16 MXU-input path (f32 accumulation + f32/bf16 softmax exp): looser tol.
    out_bf16 = jax.block_until_ready(
        multi_head_attention(x, params, H, compute_dtype=jnp.bfloat16))
    assert out_bf16.shape == (B, T, C)
    assert np.allclose(np.asarray(out_bf16), np.asarray(ref), atol=5e-2, rtol=5e-2)

    # Multi-query-tile path (exercises the (B, num_q_tiles) grid + resident K/V).
    T2 = 64
    x2 = jax.random.normal(keys[9], (B, T2, C), jnp.float32)
    ref2 = _reference_mha(x2, params, H)
    out2 = jax.block_until_ready(
        multi_head_attention(x2, params, H, compute_dtype=jnp.bfloat16, q_tile=16))
    assert out2.shape == (B, T2, C)
    assert np.allclose(np.asarray(out2), np.asarray(ref2), atol=5e-2, rtol=5e-2)

    print("KERNEL_OK")
</pallas_src>

<mosaic_0001>
module attributes {stable_mosaic.version = 11 : i64} {
  func.func @_qkv_proj_kernel(%arg0: i32, %arg1: memref<16x32xf32, #tpu.memory_space<vmem>>, %arg2: memref<3x32x32xf32, #tpu.memory_space<vmem>>, %arg3: memref<3x1x32xf32, #tpu.memory_space<vmem>>, %arg4: memref<16x32xf32, #tpu.memory_space<vmem>>, %arg5: memref<16x32xf32, #tpu.memory_space<vmem>>, %arg6: memref<16x32xf32, #tpu.memory_space<vmem>>) attributes {dimension_semantics = [#tpu.dimension_semantics<parallel>], iteration_bounds = array<i64: 1>, scalar_prefetch = 0 : i64, scratch_operands = 0 : i64, tpu.core_type = #tpu.core_type<tc>, window_params = [{transform_indices = @transform_0, window_bounds = array<i64: 16, 32>}, {pipeline_mode = #tpu.pipeline_mode<synchronous>, transform_indices = @transform_1, window_bounds = array<i64: 3, 32, 32>}, {pipeline_mode = #tpu.pipeline_mode<synchronous>, transform_indices = @transform_2, window_bounds = array<i64: 3, 1, 32>}, {transform_indices = @transform_3, window_bounds = array<i64: 16, 32>}, {transform_indices = @transform_4, window_bounds = array<i64: 16, 32>}, {transform_indices = @transform_5, window_bounds = array<i64: 16, 32>}]} {
    %c0 = arith.constant 0 : index
    %c0_0 = arith.constant 0 : index
    %0 = vector.load %arg1[%c0, %c0_0] : memref<16x32xf32, #tpu.memory_space<vmem>>, vector<16x32xf32>
    %c0_1 = arith.constant 0 : index
    %c0_2 = arith.constant 0 : index
    %c0_3 = arith.constant 0 : index
    %1 = vector.load %arg2[%c0_1, %c0_2, %c0_3] : memref<3x32x32xf32, #tpu.memory_space<vmem>>, vector<1x32x32xf32>
    %2 = vector.shape_cast %1 : vector<1x32x32xf32> to vector<32x32xf32>
    %cst = arith.constant dense<0.000000e+00> : vector<16x32xf32>
    %3 = tpu.matmul %0, %2, %cst {dimension_numbers = #tpu.dot_dimension_numbers<[1], [0], [0], [1], [0, 0, 1, 1], [], []>} : vector<16x32xf32>, vector<32x32xf32>, vector<16x32xf32> -> vector<16x32xf32>
    %c0_4 = arith.constant 0 : index
    %c0_5 = arith.constant 0 : index
    %c0_6 = arith.constant 0 : index
    %4 = vector.load %arg3[%c0_4, %c0_5, %c0_6] : memref<3x1x32xf32, #tpu.memory_space<vmem>>, vector<1x1x32xf32>
    %5 = vector.shape_cast %4 : vector<1x1x32xf32> to vector<1x32xf32>
    %6 = vector.broadcast %5 : vector<1x32xf32> to vector<16x32xf32>
    %7 = arith.addf %3, %6 : vector<16x32xf32>
    %c0_7 = arith.constant 0 : index
    %c0_8 = arith.constant 0 : index
    %8 = vector.load %arg4[%c0_7, %c0_8] : memref<16x32xf32, #tpu.memory_space<vmem>>, vector<16x32xf32>
    tpu.vector_store %arg4[%c0_7, %c0_8], %7 {strides = array<i32>} : memref<16x32xf32, #tpu.memory_space<vmem>>, vector<16x32xf32>,
    %c1 = arith.constant 1 : index
    %c0_9 = arith.constant 0 : index
    %c0_10 = arith.constant 0 : index
    %9 = vector.load %arg2[%c1, %c0_9, %c0_10] : memref<3x32x32xf32, #tpu.memory_space<vmem>>, vector<1x32x32xf32>
    %10 = vector.shape_cast %9 : vector<1x32x32xf32> to vector<32x32xf32>
    %cst_11 = arith.constant dense<0.000000e+00> : vector<16x32xf32>
    %11 = tpu.matmul %0, %10, %cst_11 {dimension_numbers = #tpu.dot_dimension_numbers<[1], [0], [0], [1], [0, 0, 1, 1], [], []>} : vector<16x32xf32>, vector<32x32xf32>, vector<16x32xf32> -> vector<16x32xf32>
    %c1_12 = arith.constant 1 : index
    %c0_13 = arith.constant 0 : index
    %c0_14 = arith.constant 0 : index
    %12 = vector.load %arg3[%c1_12, %c0_13, %c0_14] : memref<3x1x32xf32, #tpu.memory_space<vmem>>, vector<1x1x32xf32>
    %13 = vector.shape_cast %12 : vector<1x1x32xf32> to vector<1x32xf32>
    %14 = vector.broadcast %13 : vector<1x32xf32> to vector<16x32xf32>
    %15 = arith.addf %11, %14 : vector<16x32xf32>
    %c0_15 = arith.constant 0 : index
    %c0_16 = arith.constant 0 : index
    %16 = vector.load %arg5[%c0_15, %c0_16] : memref<16x32xf32, #tpu.memory_space<vmem>>, vector<16x32xf32>
    tpu.vector_store %arg5[%c0_15, %c0_16], %15 {strides = array<i32>} : memref<16x32xf32, #tpu.memory_space<vmem>>, vector<16x32xf32>,
    %c2 = arith.constant 2 : index
    %c0_17 = arith.constant 0 : index
    %c0_18 = arith.constant 0 : index
    %17 = vector.load %arg2[%c2, %c0_17, %c0_18] : memref<3x32x32xf32, #tpu.memory_space<vmem>>, vector<1x32x32xf32>
    %18 = vector.shape_cast %17 : vector<1x32x32xf32> to vector<32x32xf32>
    %cst_19 = arith.constant dense<0.000000e+00> : vector<16x32xf32>
    %19 = tpu.matmul %0, %18, %cst_19 {dimension_numbers = #tpu.dot_dimension_numbers<[1], [0], [0], [1], [0, 0, 1, 1], [], []>} : vector<16x32xf32>, vector<32x32xf32>, vector<16x32xf32> -> vector<16x32xf32>
    %c2_20 = arith.constant 2 : index
    %c0_21 = arith.constant 0 : index
    %c0_22 = arith.constant 0 : index
    %20 = vector.load %arg3[%c2_20, %c0_21, %c0_22] : memref<3x1x32xf32, #tpu.memory_space<vmem>>, vector<1x1x32xf32>
    %21 = vector.shape_cast %20 : vector<1x1x32xf32> to vector<1x32xf32>
    %22 = vector.broadcast %21 : vector<1x32xf32> to vector<16x32xf32>
    %23 = arith.addf %19, %22 : vector<16x32xf32>
    %c0_23 = arith.constant 0 : index
    %c0_24 = arith.constant 0 : index
    %24 = vector.load %arg6[%c0_23, %c0_24] : memref<16x32xf32, #tpu.memory_space<vmem>>, vector<16x32xf32>
    tpu.vector_store %arg6[%c0_23, %c0_24], %23 {strides = array<i32>} : memref<16x32xf32, #tpu.memory_space<vmem>>, vector<16x32xf32>,
    return
  }
  func.func @transform_0(%arg0: i32) -> (i32, i32) {
    %c0_i32 = arith.constant 0 : i32
    %c0_i32_0 = arith.constant 0 : i32
    return %arg0, %c0_i32 : i32, i32
  }
  func.func @transform_1(%arg0: i32) -> (i32, i32, i32) {
    %c0_i32 = arith.constant 0 : i32
    %c0_i32_0 = arith.constant 0 : i32
    %c0_i32_1 = arith.constant 0 : i32
    %c0_i32_2 = arith.constant 0 : i32
    return %c0_i32, %c0_i32_0, %c0_i32_1 : i32, i32, i32
  }
  func.func @transform_2(%arg0: i32) -> (i32, i32, i32) {
    %c0_i32 = arith.constant 0 : i32
    %c0_i32_0 = arith.constant 0 : i32
    %c0_i32_1 = arith.constant 0 : i32
    %c0_i32_2 = arith.constant 0 : i32
    return %c0_i32, %c0_i32_0, %c0_i32_1 : i32, i32, i32
  }
  func.func @transform_3(%arg0: i32) -> (i32, i32) {
    %c0_i32 = arith.constant 0 : i32
    %c0_i32_0 = arith.constant 0 : i32
    return %arg0, %c0_i32 : i32, i32
  }
  func.func @transform_4(%arg0: i32) -> (i32, i32) {
    %c0_i32 = arith.constant 0 : i32
    %c0_i32_0 = arith.constant 0 : i32
    return %arg0, %c0_i32 : i32, i32
  }
  func.func @transform_5(%arg0: i32) -> (i32, i32) {
    %c0_i32 = arith.constant 0 : i32
    %c0_i32_0 = arith.constant 0 : i32
    return %arg0, %c0_i32 : i32, i32
  }
}

</mosaic_0001>

<llo_original>
// kernel: tpu_custom_call.1
$region0: #{tpu_custom_call.1}
  #allocation0 [shape = 'u32[]', space=smem, size = 0x4, offset = 0x4, fixed_abs, tag = 'smem constant byte address 0x4 - core index']
  #allocation1 [shape = 'u32[72,128]{1,0:T(1,128)}', space=vmem, size = 0x9000, scoped, tag = 'internal scratch']
  %s0 = inlined_call_operand.hbm [shape: f32[16,32], index: 0, kind: input, shape index: {}]
  %s1 = inlined_call_operand.hbm [shape: f32[3,32,32], index: 1, kind: input, shape index: {}]
  %s2 = inlined_call_operand.hbm [shape: f32[3,1,32], index: 2, kind: input, shape index: {}]
  %s3 = inlined_call_operand.hbm [shape: f32[16,32], index: 3, kind: output, shape index: {0}]
  %s4 = inlined_call_operand.hbm [shape: f32[16,32], index: 4, kind: output, shape index: {1}]
  %s5 = inlined_call_operand.hbm [shape: f32[16,32], index: 5, kind: output, shape index: {2}]
  %6 = xla_tuple %s3, %s4, %s5
  %s7 = sld [smem:[#allocation0]]
  $region50: #{tpu_custom_call.1} parent=0
    _
  %s9 = ssub.s32 1, %s7
  %s10 = scalar_select 0, %s9, %s7
  $region1: #{tpu_custom_call.1} parent=0
    #allocation2 [shape = 'u8[8192]{0}', space=vmem, size = 0x2000, scoped, tag = 'input window, operand 0, single buffered']
    #allocation3 [shape = 's32[1]{0}', space=sflag, size = 0x4, scoped, tag = 'scoped memory for tpu_custom_call.1']
    #allocation4 [shape = 's32[1]{0}', space=sflag, size = 0x4, scoped, tag = 'scoped memory for tpu_custom_call.1']
    #allocation5 [shape = 'u8[49152]{0}', space=vmem, size = 0xc000, scoped, tag = 'input window, operand 1, single buffered']
    #allocation6 [shape = 's32[1]{0}', space=sflag, size = 0x4, scoped, tag = 'scoped memory for tpu_custom_call.1']
    #allocation7 [shape = 'u8[1536]{0}', space=vmem, size = 0x800, scoped, tag = 'input window, operand 2, single buffered']
    #allocation8 [shape = 'u8[8192]{0}', space=vmem, size = 0x2000, scoped, tag = 'output window, operand 0, single buffered']
    #allocation9 [shape = 'u8[8192]{0}', space=vmem, size = 0x2000, scoped, tag = 'output window, operand 1, single buffered']
    #allocation10 [shape = 's32[1]{0}', space=sflag, size = 0x4, scoped, tag = 'scoped memory for tpu_custom_call.1']
    #allocation11 [shape = 'u8[8192]{0}', space=vmem, size = 0x2000, scoped, tag = 'output window, operand 2, single buffered']
    %11 = vsyncpa [#allocation3], 0
    %12 = vsyncpa [#allocation6], 0
    %13 = vsyncpa [#allocation4], 0
    %14 = vsyncpa [#allocation10], 0
    // Predicated region
    $region2: #{tpu_custom_call.1} parent=1 // pred_check
      _
    $region3: #{tpu_custom_call.1} parent=1 // pred_check_branch
      %16 = sbr.rel (0) target = $region5
    $region4: #{tpu_custom_call.1} parent=1 // pred_region
      %18 = vsyncadd [#allocation3], 0
      %s19 = sshll.u32 %s0, 4
      %s20 = int_to_ptr.hbm [resolvable:$true] %s19
      %s21 = sshll.u32 [#allocation2], 4
      %s22 = int_to_ptr.vmem [resolvable:$true] %s21
      %27 = dma.hbm_to_vmem [thread:$0]  %s20, 256, %s22, [#allocation3], 128, 128, 8
    $region5: #{tpu_custom_call.1} parent=1 // pred_fallthru
      _
    // Predicated region
    $region6: #{tpu_custom_call.1} parent=1 // pred_check
      _
    $region7: #{tpu_custom_call.1} parent=1 // pred_check_branch
      %29 = sbr.rel (0) target = $region9
    $region8: #{tpu_custom_call.1} parent=1 // pred_region
      %31 = vsyncadd [#allocation6], 0
      %s32 = sshll.u32 %s1, 4
      %s33 = int_to_ptr.hbm [resolvable:$true] %s32
      %s34 = sshll.u32 [#allocation5], 4
      %s35 = int_to_ptr.vmem [resolvable:$true] %s34
      %40 = dma.hbm_to_vmem [thread:$0]  %s33, 1536, %s35, [#allocation6], 128, 128, 8
    $region9: #{tpu_custom_call.1} parent=1 // pred_fallthru
      _
    // Predicated region
    $region10: #{tpu_custom_call.1} parent=1 // pred_check
      _
    $region11: #{tpu_custom_call.1} parent=1 // pred_check_branch
      %42 = sbr.rel (0) target = $region13
    $region12: #{tpu_custom_call.1} parent=1 // pred_region
      %44 = vsyncadd [#allocation6], 0
      %s45 = sshll.u32 %s2, 4
      %s46 = int_to_ptr.hbm [resolvable:$true] %s45
      %s47 = sshll.u32 [#allocation7], 4
      %s48 = int_to_ptr.vmem [resolvable:$true] %s47
      %53 = dma.hbm_to_vmem [thread:$0]  %s46, 48, %s48, [#allocation6], 16, 16, 1
    $region13: #{tpu_custom_call.1} parent=1 // pred_fallthru
      _
    // Predicated region
    $region14: #{tpu_custom_call.1} parent=1 // pred_check
      _
    $region15: #{tpu_custom_call.1} parent=1 // pred_check_branch
      %55 = sbr.rel (0) target = $region17
    $region16: #{tpu_custom_call.1} parent=1 // pred_region
      %57 = dma.done [#allocation3], 256
    $region17: #{tpu_custom_call.1} parent=1 // pred_fallthru
      _
    // Predicated region
    $region18: #{tpu_custom_call.1} parent=1 // pred_check
      _
    $region19: #{tpu_custom_call.1} parent=1 // pred_check_branch
      %59 = sbr.rel (0) target = $region21
    $region20: #{tpu_custom_call.1} parent=1 // pred_region
      %61 = dma.done [#allocation6], 1536
    $region21: #{tpu_custom_call.1} parent=1 // pred_fallthru
      _
    // Predicated region
    $region22: #{tpu_custom_call.1} parent=1 // pred_check
      _
    $region23: #{tpu_custom_call.1} parent=1 // pred_check_branch
      %63 = sbr.rel (0) target = $region25
    $region24: #{tpu_custom_call.1} parent=1 // pred_region
      %65 = dma.done [#allocation6], 48
    $region25: #{tpu_custom_call.1} parent=1 // pred_fallthru
      _
    %v66 = vld [vmem:[#allocation2] sm:$0xff]
    %v67 = vld [vmem:[#allocation2 + $0x8] sm:$0xff]
    %v68 = vld [vmem:[#allocation5] sm:$0xff]
    %v69 = vld [vmem:[#allocation5 + $0x8] sm:$0xff]
    %v70 = vld [vmem:[#allocation5 + $0x10] sm:$0xff]
    %v71 = vld [vmem:[#allocation5 + $0x18] sm:$0xff]
    %v72 = vld [vmem:[#allocation7] sm:$0x1]
    %v74 = vperm.slane %v72, 0
    %vm76 = vcmask 261120
    %v78 = vsel %vm76, %v66, 0
    %v81 = vsel %vm76, %v67, 0
    %83 = vmatpush.msra.mxu0 0.0
    %84 = vmatpush.msra.mxu0 0.0
    %85 = vmatpush.msra.mxu0 0.0
    %86 = vmatpush.msra.mxu0 0.0
    %87 = vmatpush.msra.mxu0 0.0
    %88 = vmatpush.msra.mxu0 0.0
    %89 = vmatpush.msra.mxu0 0.0
    %90 = vmatpush.msra.mxu0 0.0
    %91 = vmatpush.msra.mxu0 0.0
    %92 = vmatpush.msra.mxu0 0.0
    %93 = vmatpush.msra.mxu0 0.0
    %94 = vmatpush.msra.mxu0 0.0
    %95 = vmatpush.msra.mxu0 %v71
    %96 = vmatpush.msra.mxu0 %v70
    %97 = vmatpush.msra.mxu0 %v69
    %98 = vmatpush.msra.mxu0 %v68
    %99 = vmatmul.f32.gmra.mxu0 %v78
    %v100 = vpop.f32.mrf.mxu0
    %v101 = vadd.f32 %v74, %v100
    %102 = vmatmul.f32.gmra.mxu0 %v81
    %v103 = vpop.f32.mrf.mxu0
    %v104 = vadd.f32 %v74, %v103
    %105 = vdwg.mxu0
    %106 = vst.msk [vmem:[#allocation8] sm:$0xff] %vm76, %v101
    %107 = vst.msk [vmem:[#allocation8 + $0x8] sm:$0xff] %vm76, %v104
    %s108 = scalar_lea.vmem [#allocation5], 32
    %v109 = vld [vmem:[%s108] sm:$0xff]
    %v110 = vld [vmem:[%s108 + $0x8] sm:$0xff]
    %v111 = vld [vmem:[%s108 + $0x10] sm:$0xff]
    %v112 = vld [vmem:[%s108 + $0x18] sm:$0xff]
    %s113 = scalar_lea.vmem [#allocation7], 1
    %v114 = vld [vmem:[%s113] sm:$0x1]
    %v116 = vperm.slane %v114, 0
    %118 = vmatpush.msra.mxu0 0.0
    %119 = vmatpush.msra.mxu0 0.0
    %120 = vmatpush.msra.mxu0 0.0
    %121 = vmatpush.msra.mxu0 0.0
    %122 = vmatpush.msra.mxu0 0.0
    %123 = vmatpush.msra.mxu0 0.0
    %124 = vmatpush.msra.mxu0 0.0
    %125 = vmatpush.msra.mxu0 0.0
    %126 = vmatpush.msra.mxu0 0.0
    %127 = vmatpush.msra.mxu0 0.0
    %128 = vmatpush.msra.mxu0 0.0
    %129 = vmatpush.msra.mxu0 0.0
    %130 = vmatpush.msra.mxu0 %v112
    %131 = vmatpush.msra.mxu0 %v111
    %132 = vmatpush.msra.mxu0 %v110
    %133 = vmatpush.msra.mxu0 %v109
    %134 = vmatmul.f32.gmra.mxu0 %v78
    %v135 = vpop.f32.mrf.mxu0
    %v136 = vadd.f32 %v116, %v135
    %137 = vmatmul.f32.gmra.mxu0 %v81
    %v138 = vpop.f32.mrf.mxu0
    %v139 = vadd.f32 %v116, %v138
    %140 = vdwg.mxu0
    %141 = vst.msk [vmem:[#allocation9] sm:$0xff] %vm76, %v136
    %142 = vst.msk [vmem:[#allocation9 + $0x8] sm:$0xff] %vm76, %v139
    %s143 = scalar_lea.vmem [#allocation5], 64
    %v144 = vld [vmem:[%s143] sm:$0xff]
    %v145 = vld [vmem:[%s143 + $0x8] sm:$0xff]
    %v146 = vld [vmem:[%s143 + $0x10] sm:$0xff]
    %v147 = vld [vmem:[%s143 + $0x18] sm:$0xff]
    %s148 = scalar_lea.vmem [#allocation7], 2
    %v149 = vld [vmem:[%s148] sm:$0x1]
    %v151 = vperm.slane %v149, 0
    %153 = vmatpush.msra.mxu0 0.0
    %154 = vmatpush.msra.mxu0 0.0
    %155 = vmatpush.msra.mxu0 0.0
    %156 = vmatpush.msra.mxu0 0.0
    %157 = vmatpush.msra.mxu0 0.0
    %158 = vmatpush.msra.mxu0 0.0
    %159 = vmatpush.msra.mxu0 0.0
    %160 = vmatpush.msra.mxu0 0.0
    %161 = vmatpush.msra.mxu0 0.0
    %162 = vmatpush.msra.mxu0 0.0
    %163 = vmatpush.msra.mxu0 0.0
    %164 = vmatpush.msra.mxu0 0.0
    %165 = vmatpush.msra.mxu0 %v147
    %166 = vmatpush.msra.mxu0 %v146
    %167 = vmatpush.msra.mxu0 %v145
    %168 = vmatpush.msra.mxu0 %v144
    %169 = vmatmul.f32.gmra.mxu0 %v78
    %v170 = vpop.f32.mrf.mxu0
    %v171 = vadd.f32 %v151, %v170
    %172 = vmatmul.f32.gmra.mxu0 %v81
    %v173 = vpop.f32.mrf.mxu0
    %v174 = vadd.f32 %v151, %v173
    %175 = vdwg.mxu0
    %176 = vst.msk [vmem:[#allocation11] sm:$0xff] %vm76, %v171
    %177 = vst.msk [vmem:[#allocation11 + $0x8] sm:$0xff] %vm76, %v174
    // Predicated region
    $region26: #{tpu_custom_call.1} parent=1 // pred_check
      _
    $region27: #{tpu_custom_call.1} parent=1 // pred_check_branch
      %179 = sbr.rel (0) target = $region29
    $region28: #{tpu_custom_call.1} parent=1 // pred_region
      %181 = vsyncadd [#allocation4], 0
      %s182 = sshll.u32 [#allocation8], 4
      %s183 = int_to_ptr.vmem [resolvable:$true] %s182
      %s184 = sshll.u32 %s3, 4
      %s185 = int_to_ptr.hbm [resolvable:$true] %s184
      %190 = dma.vmem_to_hbm [thread:$0]  %s183, 256, %s185, [#allocation4], 128, 128, 8
    $region29: #{tpu_custom_call.1} parent=1 // pred_fallthru
      _
    // Predicated region
    $region30: #{tpu_custom_call.1} parent=1 // pred_check
      _
    $region31: #{tpu_custom_call.1} parent=1 // pred_check_branch
      %192 = sbr.rel (0) target = $region33
    $region32: #{tpu_custom_call.1} parent=1 // pred_region
      %194 = vsyncadd [#allocation10], 0
      %s195 = sshll.u32 [#allocation9], 4
      %s196 = int_to_ptr.vmem [resolvable:$true] %s195
      %s197 = sshll.u32 %s4, 4
      %s198 = int_to_ptr.hbm [resolvable:$true] %s197
      %203 = dma.vmem_to_hbm [thread:$0]  %s196, 256, %s198, [#allocation10], 128, 128, 8
    $region33: #{tpu_custom_call.1} parent=1 // pred_fallthru
      _
    // Predicated region
    $region34: #{tpu_custom_call.1} parent=1 // pred_check
      _
    $region35: #{tpu_custom_call.1} parent=1 // pred_check_branch
      %205 = sbr.rel (0) target = $region37
    $region36: #{tpu_custom_call.1} parent=1 // pred_region
      %207 = vsyncadd [#allocation10], 0
      %s208 = sshll.u32 [#allocation11], 4
      %s209 = int_to_ptr.vmem [resolvable:$true] %s208
      %s210 = sshll.u32 %s5, 4
      %s211 = int_to_ptr.hbm [resolvable:$true] %s210
      %216 = dma.vmem_to_hbm [thread:$0]  %s209, 256, %s211, [#allocation10], 128, 128, 8
    $region37: #{tpu_custom_call.1} parent=1 // pred_fallthru
      _
    // Predicated region
    $region38: #{tpu_custom_call.1} parent=1 // pred_check
      _
    $region39: #{tpu_custom_call.1} parent=1 // pred_check_branch
      %218 = sbr.rel (0) target = $region41
    $region40: #{tpu_custom_call.1} parent=1 // pred_region
      %220 = dma.done [#allocation4], 256
    $region41: #{tpu_custom_call.1} parent=1 // pred_fallthru
      _
    // Predicated region
    $region42: #{tpu_custom_call.1} parent=1 // pred_check
      _
    $region43: #{tpu_custom_call.1} parent=1 // pred_check_branch
      %222 = sbr.rel (0) target = $region45
    $region44: #{tpu_custom_call.1} parent=1 // pred_region
      %224 = dma.done [#allocation10], 256
    $region45: #{tpu_custom_call.1} parent=1 // pred_fallthru
      _
    // Predicated region
    $region46: #{tpu_custom_call.1} parent=1 // pred_check
      _
    $region47: #{tpu_custom_call.1} parent=1 // pred_check_branch
      %226 = sbr.rel (0) target = $region49
    $region48: #{tpu_custom_call.1} parent=1 // pred_region
      %228 = dma.done [#allocation10], 256
    $region49: #{tpu_custom_call.1} parent=1 // pred_fallthru
      _
    %229 = vsyncpa [#allocation3], 1
    %230 = vsyncpa [#allocation6], 1
    %231 = vsyncpa [#allocation4], 1
    %232 = vsyncpa [#allocation10], 1

</llo_original>
